<compile_context>
chip_gen: v7x
topology: tpu7x:2x2x1
jax: 0.10.0
libtpu: 0.0.40
codegen_flags: <defaults>
</compile_context>

<pallas_src>
import jax
import jax.numpy as jnp
from jax import lax
from jax.experimental import pallas as pl
from jax.experimental.pallas import tpu as pltpu

# PyTorch model layer dims: in -> 32 -> 32 -> 16 -> out
NUM_LAYERS = 4
PAD_DIM = 32              # hidden feature dims zero-padded to 32 sublanes
MAX_TILE_B = 16 * 1024    # batch-tile cap (review: 8K-32K range for large B)
SINGLE_TILE_MAX = 1024    # below this, one full-array block (no split, no pad)


def mlp_kernel(x_ref, w1_ref, wr_ref, b_ref, o_ref):
    """One batch tile of the fused MLP (all accumulation in f32).

    x_ref:  (TILE_B, IN_DIM)                  raw input rows (batch on sublanes)
    w1_ref: (PAD_DIM, IN_DIM)                 layer-1 weight, (fan_out, fan_in)
    wr_ref: (NUM_LAYERS-1, PAD_DIM, PAD_DIM)  layers 2..4, transposed + zero-padded
    b_ref:  (NUM_LAYERS, PAD_DIM, 1)          biases, zero-padded
    o_ref:  (OUT_SUBLANES, TILE_B)            lane-dense output slab
    """
    # Layer 1: fold the (batch, feat) -> (feat, batch) transpose into the
    # matmul by contracting the last axes of both operands (A @ B^T form).
    h = lax.dot_general(
        w1_ref[...], x_ref[...],
        dimension_numbers=(((1,), (1,)), ((), ())),
        preferred_element_type=jnp.float32) + b_ref[0]
    h = jnp.maximum(h, 0.0)
    # Layers 2..3: Linear + ReLU in (features, batch) layout (batch on lanes).
    for l in range(NUM_LAYERS - 2):
        h = jnp.dot(wr_ref[l], h, preferred_element_type=jnp.float32) + b_ref[l + 1]
        h = jnp.maximum(h, 0.0)
    # Layer 4: Linear, no activation.
    h = (jnp.dot(wr_ref[NUM_LAYERS - 2], h, preferred_element_type=jnp.float32)
         + b_ref[NUM_LAYERS - 1])
    o_ref[...] = h[: o_ref.shape[0], :].astype(o_ref.dtype)


def pack_params(params):
    """Pack the 4 (w, b) pairs for the kernel.

    Incoming weights are (fan_in, fan_out) so that x @ W == PyTorch x @ W.T.
    Layer 1 is kept UNPADDED along fan_in so the kernel can contract directly
    against raw (tile_b, in_dim) input rows; layers 2..4 are stored transposed
    (fan_out, fan_in) and zero-padded to (32, 32).  Zero padding guarantees the
    padded rows of every intermediate activation stay exactly zero.
    """
    ws = params[0::2]
    bs = params[1::2]
    in_dim = ws[0].shape[0]

    w1 = jnp.zeros((PAD_DIM, in_dim), jnp.float32)
    w1 = w1.at[: ws[0].shape[1], :].set(ws[0].T.astype(jnp.float32))

    wr = jnp.zeros((NUM_LAYERS - 1, PAD_DIM, PAD_DIM), jnp.float32)
    b = jnp.zeros((NUM_LAYERS, PAD_DIM, 1), jnp.float32)
    b = b.at[0, : bs[0].size, 0].set(bs[0].reshape(-1).astype(jnp.float32))
    for l in range(1, NUM_LAYERS):
        fan_in, fan_out = ws[l].shape
        wr = wr.at[l - 1, :fan_out, :fan_in].set(ws[l].T.astype(jnp.float32))
        b = b.at[l, :fan_out, 0].set(bs[l].reshape(-1).astype(jnp.float32))
    return w1, wr, b


def _choose_tile_b(batch, max_tile_b):
    """Pick (tile_b, grid_b).

    Small batches: a single full-array block (block dims == array dims; legal
    regardless of (8,128) divisibility, and no padding at all).
    Large batches: 128-lane multiples capped at max_tile_b, but always >= 2
    grid steps so dimension_semantics=("parallel",) can shard across both v7x
    TensorCores.  The last (possibly partial) input block is boundary-masked.
    """
    if batch <= SINGLE_TILE_MAX:
        return batch, 1
    half = -(-batch // 2)                          # ceil(batch / 2)
    tile = min(max_tile_b, -(-half // 128) * 128)  # round up to 128 lanes
    tile = max(tile, 128)
    return tile, pl.cdiv(batch, tile)


def mlp_forward(x, params, *, max_tile_b=MAX_TILE_B):
    B, in_dim = x.shape
    out_dim = params[-2].shape[1]
    # Review correctness concern: a wider head must not silently truncate.
    assert out_dim <= PAD_DIM, "output head wider than padded feature dim"
    out_sub = max(8, ((out_dim + 7) // 8) * 8)     # full-sublane epilogue store

    w1, wr_slab, b_slab = pack_params(params)

    tile_b, grid_b = _choose_tile_b(B, max_tile_b)
    b_pad = tile_b * grid_b        # only the (tiny) output array is padded; x is not

    flops = 2 * B * sum(int(w.shape[0]) * int(w.shape[1]) for w in params[0::2])
    bytes_accessed = 4 * (B * in_dim + b_pad * out_sub
                          + int(w1.size) + int(wr_slab.size) + int(b_slab.size))

    out_t = pl.pallas_call(
        mlp_kernel,
        out_shape=jax.ShapeDtypeStruct((out_sub, b_pad), jnp.float32),
        grid_spec=pltpu.PrefetchScalarGridSpec(
            num_scalar_prefetch=0,
            grid=(grid_b,),
            in_specs=[
                # Raw input rows stream along the batch grid axis (no host-side
                # transpose or pad); final partial block is boundary-masked and
                # only feeds discarded output columns.
                pl.BlockSpec((tile_b, in_dim), lambda i: (i, 0)),
                # Constant index maps -> weights/biases DMA'd once, VMEM
                # resident across the whole grid.
                pl.BlockSpec((PAD_DIM, in_dim), lambda i: (0, 0)),
                pl.BlockSpec((NUM_LAYERS - 1, PAD_DIM, PAD_DIM),
                             lambda i: (0, 0, 0)),
                pl.BlockSpec((NUM_LAYERS, PAD_DIM, 1), lambda i: (0, 0, 0)),
            ],
            out_specs=pl.BlockSpec((out_sub, tile_b), lambda i: (0, i)),
        ),
        compiler_params=pltpu.CompilerParams(
            dimension_semantics=("parallel",),    # shard batch tiles across TCs (v7x)
            # 2 x 16K-row input buffers (lane-padded) + activations fit easily;
            # safe on v5e/v6e (128 MiB) and under v7x's 64 MiB per-TC VMEM.
            vmem_limit_bytes=40 * 1024 * 1024,
        ),
        cost_estimate=pl.CostEstimate(
            flops=flops, transcendentals=0, bytes_accessed=bytes_accessed),
    )(x.astype(jnp.float32), w1, wr_slab, b_slab)

    # Back to PyTorch's (batch, out_dim) layout; drop feature/batch padding.
    return out_t[:out_dim, :B].T


def init_params(key, input_dim, output_dim):
    # Deterministic init mimicking nn.Linear's uniform(-1/sqrt(fan_in), 1/sqrt(fan_in)).
    dims = [(input_dim, 32), (32, 32), (32, 16), (16, output_dim)]
    params = []
    for fan_in, fan_out in dims:
        kw, kb, key = jax.random.split(key, 3)
        bound = 1.0 / jnp.sqrt(float(fan_in))
        w = jax.random.uniform(kw, (fan_in, fan_out), jnp.float32, -bound, bound)
        b = jax.random.uniform(kb, (1, fan_out), jnp.float32, -bound, bound)
        params.extend([w, b])
    return tuple(params)


def reference_forward(x, params):
    (w1, b1, w2, b2, w3, b3, w4, b4) = params
    h = jnp.maximum(x @ w1 + b1, 0.0)
    h = jnp.maximum(h @ w2 + b2, 0.0)
    h = jnp.maximum(h @ w3 + b3, 0.0)
    return h @ w4 + b4


if __name__ == "__main__":
    key = jax.random.PRNGKey(0)
    kx, kp, kx2 = jax.random.split(key, 3)

    batch = 8
    input_dim = 13   # Boston housing feature count
    output_dim = 1
    # TODO(synk): load_boston dataset loading is not reproduced; deterministic
    # random inputs of the same shape are used instead.

    x = jax.random.normal(kx, (batch, input_dim), dtype=jnp.float32)
    params = init_params(kp, input_dim, output_dim)

    out = jax.block_until_ready(mlp_forward(x, params))
    ref = reference_forward(x, params)
    assert out.shape == (batch, output_dim)
    assert jnp.allclose(out, ref, atol=1e-5, rtol=1e-5)

    # Also exercise the multi-tile path (grid >= 2, partial boundary block).
    x_big = jax.random.normal(kx2, (2500, input_dim), dtype=jnp.float32)
    out_big = jax.block_until_ready(mlp_forward(x_big, params))
    ref_big = reference_forward(x_big, params)
    assert out_big.shape == (2500, output_dim)
    assert jnp.allclose(out_big, ref_big, atol=1e-4, rtol=1e-4)

    print("KERNEL_OK")
</pallas_src>

<mosaic_0001>
module attributes {stable_mosaic.version = 11 : i64} {
  func.func @mlp_kernel(%arg0: i32, %arg1: memref<8x13xf32, #tpu.memory_space<vmem>>, %arg2: memref<32x13xf32, #tpu.memory_space<vmem>>, %arg3: memref<3x32x32xf32, #tpu.memory_space<vmem>>, %arg4: memref<4x32x1xf32, #tpu.memory_space<vmem>>, %arg5: memref<8x8xf32, #tpu.memory_space<vmem>>) attributes {dimension_semantics = [#tpu.dimension_semantics<parallel>], iteration_bounds = array<i64: 1>, scalar_prefetch = 0 : i64, scratch_operands = 0 : i64, tpu.core_type = #tpu.core_type<tc>, window_params = [{transform_indices = @transform_0, window_bounds = array<i64: 8, 13>}, {pipeline_mode = #tpu.pipeline_mode<synchronous>, transform_indices = @transform_1, window_bounds = array<i64: 32, 13>}, {pipeline_mode = #tpu.pipeline_mode<synchronous>, transform_indices = @transform_2, window_bounds = array<i64: 3, 32, 32>}, {pipeline_mode = #tpu.pipeline_mode<synchronous>, transform_indices = @transform_3, window_bounds = array<i64: 4, 32, 1>}, {transform_indices = @transform_4, window_bounds = array<i64: 8, 8>}]} {
    %c0 = arith.constant 0 : index
    %c0_0 = arith.constant 0 : index
    %0 = vector.load %arg2[%c0, %c0_0] : memref<32x13xf32, #tpu.memory_space<vmem>>, vector<32x13xf32>
    %c0_1 = arith.constant 0 : index
    %c0_2 = arith.constant 0 : index
    %1 = vector.load %arg1[%c0_1, %c0_2] : memref<8x13xf32, #tpu.memory_space<vmem>>, vector<8x13xf32>
    %cst = arith.constant dense<0.000000e+00> : vector<32x8xf32>
    %2 = tpu.matmul %0, %1, %cst {dimension_numbers = #tpu.dot_dimension_numbers<[1], [1], [0], [0], [0, 0, 1, 0], [], []>} : vector<32x13xf32>, vector<8x13xf32>, vector<32x8xf32> -> vector<32x8xf32>
    %c0_3 = arith.constant 0 : index
    %c0_4 = arith.constant 0 : index
    %c0_5 = arith.constant 0 : index
    %3 = vector.load %arg4[%c0_3, %c0_4, %c0_5] : memref<4x32x1xf32, #tpu.memory_space<vmem>>, vector<1x32x1xf32>
    %4 = vector.shape_cast %3 : vector<1x32x1xf32> to vector<32x1xf32>
    %5 = vector.broadcast %4 : vector<32x1xf32> to vector<32x8xf32>
    %6 = arith.addf %2, %5 : vector<32x8xf32>
    %cst_6 = arith.constant 0.000000e+00 : f32
    %7 = vector.broadcast %cst_6 : f32 to vector<32x8xf32>
    %8 = arith.maximumf %6, %7 : vector<32x8xf32>
    %c0_7 = arith.constant 0 : index
    %c0_8 = arith.constant 0 : index
    %c0_9 = arith.constant 0 : index
    %9 = vector.load %arg3[%c0_7, %c0_8, %c0_9] : memref<3x32x32xf32, #tpu.memory_space<vmem>>, vector<1x32x32xf32>
    %10 = vector.shape_cast %9 : vector<1x32x32xf32> to vector<32x32xf32>
    %cst_10 = arith.constant dense<0.000000e+00> : vector<32x8xf32>
    %11 = tpu.matmul %10, %8, %cst_10 {dimension_numbers = #tpu.dot_dimension_numbers<[1], [0], [0], [1], [0, 0, 1, 1], [], []>} : vector<32x32xf32>, vector<32x8xf32>, vector<32x8xf32> -> vector<32x8xf32>
    %c1 = arith.constant 1 : index
    %c0_11 = arith.constant 0 : index
    %c0_12 = arith.constant 0 : index
    %12 = vector.load %arg4[%c1, %c0_11, %c0_12] : memref<4x32x1xf32, #tpu.memory_space<vmem>>, vector<1x32x1xf32>
    %13 = vector.shape_cast %12 : vector<1x32x1xf32> to vector<32x1xf32>
    %14 = vector.broadcast %13 : vector<32x1xf32> to vector<32x8xf32>
    %15 = arith.addf %11, %14 : vector<32x8xf32>
    %cst_13 = arith.constant 0.000000e+00 : f32
    %16 = vector.broadcast %cst_13 : f32 to vector<32x8xf32>
    %17 = arith.maximumf %15, %16 : vector<32x8xf32>
    %c1_14 = arith.constant 1 : index
    %c0_15 = arith.constant 0 : index
    %c0_16 = arith.constant 0 : index
    %18 = vector.load %arg3[%c1_14, %c0_15, %c0_16] : memref<3x32x32xf32, #tpu.memory_space<vmem>>, vector<1x32x32xf32>
    %19 = vector.shape_cast %18 : vector<1x32x32xf32> to vector<32x32xf32>
    %cst_17 = arith.constant dense<0.000000e+00> : vector<32x8xf32>
    %20 = tpu.matmul %19, %17, %cst_17 {dimension_numbers = #tpu.dot_dimension_numbers<[1], [0], [0], [1], [0, 0, 1, 1], [], []>} : vector<32x32xf32>, vector<32x8xf32>, vector<32x8xf32> -> vector<32x8xf32>
    %c2 = arith.constant 2 : index
    %c0_18 = arith.constant 0 : index
    %c0_19 = arith.constant 0 : index
    %21 = vector.load %arg4[%c2, %c0_18, %c0_19] : memref<4x32x1xf32, #tpu.memory_space<vmem>>, vector<1x32x1xf32>
    %22 = vector.shape_cast %21 : vector<1x32x1xf32> to vector<32x1xf32>
    %23 = vector.broadcast %22 : vector<32x1xf32> to vector<32x8xf32>
    %24 = arith.addf %20, %23 : vector<32x8xf32>
    %cst_20 = arith.constant 0.000000e+00 : f32
    %25 = vector.broadcast %cst_20 : f32 to vector<32x8xf32>
    %26 = arith.maximumf %24, %25 : vector<32x8xf32>
    %c2_21 = arith.constant 2 : index
    %c0_22 = arith.constant 0 : index
    %c0_23 = arith.constant 0 : index
    %27 = vector.load %arg3[%c2_21, %c0_22, %c0_23] : memref<3x32x32xf32, #tpu.memory_space<vmem>>, vector<1x32x32xf32>
    %28 = vector.shape_cast %27 : vector<1x32x32xf32> to vector<32x32xf32>
    %cst_24 = arith.constant dense<0.000000e+00> : vector<32x8xf32>
    %29 = tpu.matmul %28, %26, %cst_24 {dimension_numbers = #tpu.dot_dimension_numbers<[1], [0], [0], [1], [0, 0, 1, 1], [], []>} : vector<32x32xf32>, vector<32x8xf32>, vector<32x8xf32> -> vector<32x8xf32>
    %c3 = arith.constant 3 : index
    %c0_25 = arith.constant 0 : index
    %c0_26 = arith.constant 0 : index
    %30 = vector.load %arg4[%c3, %c0_25, %c0_26] : memref<4x32x1xf32, #tpu.memory_space<vmem>>, vector<1x32x1xf32>
    %31 = vector.shape_cast %30 : vector<1x32x1xf32> to vector<32x1xf32>
    %32 = vector.broadcast %31 : vector<32x1xf32> to vector<32x8xf32>
    %33 = arith.addf %29, %32 : vector<32x8xf32>
    %34 = vector.extract_strided_slice %33 {offsets = [0, 0], sizes = [8, 8], strides = [1, 1]} : vector<32x8xf32> to vector<8x8xf32>
    %c0_27 = arith.constant 0 : index
    %c0_28 = arith.constant 0 : index
    %35 = vector.load %arg5[%c0_27, %c0_28] : memref<8x8xf32, #tpu.memory_space<vmem>>, vector<8x8xf32>
    tpu.vector_store %arg5[%c0_27, %c0_28], %34 {strides = array<i32>} : memref<8x8xf32, #tpu.memory_space<vmem>>, vector<8x8xf32>,
    return
  }
  func.func @transform_0(%arg0: i32) -> (i32, i32) {
    %c0_i32 = arith.constant 0 : i32
    %c0_i32_0 = arith.constant 0 : i32
    return %arg0, %c0_i32 : i32, i32
  }
  func.func @transform_1(%arg0: i32) -> (i32, i32) {
    %c0_i32 = arith.constant 0 : i32
    %c0_i32_0 = arith.constant 0 : i32
    %c0_i32_1 = arith.constant 0 : i32
    return %c0_i32, %c0_i32_0 : i32, i32
  }
  func.func @transform_2(%arg0: i32) -> (i32, i32, i32) {
    %c0_i32 = arith.constant 0 : i32
    %c0_i32_0 = arith.constant 0 : i32
    %c0_i32_1 = arith.constant 0 : i32
    %c0_i32_2 = arith.constant 0 : i32
    return %c0_i32, %c0_i32_0, %c0_i32_1 : i32, i32, i32
  }
  func.func @transform_3(%arg0: i32) -> (i32, i32, i32) {
    %c0_i32 = arith.constant 0 : i32
    %c0_i32_0 = arith.constant 0 : i32
    %c0_i32_1 = arith.constant 0 : i32
    %c0_i32_2 = arith.constant 0 : i32
    return %c0_i32, %c0_i32_0, %c0_i32_1 : i32, i32, i32
  }
  func.func @transform_4(%arg0: i32) -> (i32, i32) {
    %c0_i32 = arith.constant 0 : i32
    %c0_i32_0 = arith.constant 0 : i32
    return %c0_i32, %arg0 : i32, i32
  }
}

</mosaic_0001>

<llo_original>
// kernel: tpu_custom_call.1
$region0: #{tpu_custom_call.1}
  #allocation0 [shape = 'u32[]', space=smem, size = 0x4, offset = 0x4, fixed_abs, tag = 'smem constant byte address 0x4 - core index']
  #allocation1 [shape = 'u32[144,128]{1,0:T(1,128)}', space=vmem, size = 0x12000, scoped, tag = 'internal scratch']
  %s0 = inlined_call_operand.vmem [shape: f32[8,13], index: 0, kind: input, shape index: {}]
  %s1 = inlined_call_operand.vmem [shape: f32[32,13], index: 1, kind: input, shape index: {}]
  %s2 = inlined_call_operand.vmem [shape: f32[3,32,32], index: 2, kind: input, shape index: {}]
  %s3 = inlined_call_operand.vmem [shape: f32[4,32,1], index: 3, kind: input, shape index: {}]
  %s4 = inlined_call_operand.hbm [shape: f32[8,8], index: 4, kind: output, shape index: {}]
  %s5 = sld [smem:[#allocation0]]
  $region26: #{tpu_custom_call.1} parent=0
    _
  %s7 = ssub.s32 1, %s5
  %s8 = scalar_select 0, %s7, %s5
  $region1: #{tpu_custom_call.1} parent=0
    #allocation2 [shape = 'u8[4096]{0}', space=vmem, size = 0x1000, scoped, tag = 'output window, operand 0, single buffered']
    #allocation3 [shape = 's32[1]{0}', space=sflag, size = 0x4, scoped, tag = 'scoped memory for tpu_custom_call.1']
    %9 = vsyncpa [#allocation3], 0
    // Predicated region
    $region2: #{tpu_custom_call.1} parent=1 // pred_check
      _
    $region3: #{tpu_custom_call.1} parent=1 // pred_check_branch
      %11 = sbr.rel (0) target = $region5
    $region4: #{tpu_custom_call.1} parent=1 // pred_region
      _
    $region5: #{tpu_custom_call.1} parent=1 // pred_fallthru
      _
    // Predicated region
    $region6: #{tpu_custom_call.1} parent=1 // pred_check
      _
    $region7: #{tpu_custom_call.1} parent=1 // pred_check_branch
      %13 = sbr.rel (0) target = $region9
    $region8: #{tpu_custom_call.1} parent=1 // pred_region
      _
    $region9: #{tpu_custom_call.1} parent=1 // pred_fallthru
      _
    // Predicated region
    $region10: #{tpu_custom_call.1} parent=1 // pred_check
      _
    $region11: #{tpu_custom_call.1} parent=1 // pred_check_branch
      %15 = sbr.rel (0) target = $region13
    $region12: #{tpu_custom_call.1} parent=1 // pred_region
      _
    $region13: #{tpu_custom_call.1} parent=1 // pred_fallthru
      _
    // Predicated region
    $region14: #{tpu_custom_call.1} parent=1 // pred_check
      _
    $region15: #{tpu_custom_call.1} parent=1 // pred_check_branch
      %17 = sbr.rel (0) target = $region17
    $region16: #{tpu_custom_call.1} parent=1 // pred_region
      _
    $region17: #{tpu_custom_call.1} parent=1 // pred_fallthru
      _
    %v18 = vld [vmem:[%s1] sm:$0xff]
    %v19 = vld [vmem:[%s1 + $0x8] sm:$0xff]
    %v20 = vld [vmem:[%s1 + $0x10] sm:$0xff]
    %v21 = vld [vmem:[%s1 + $0x18] sm:$0xff]
    %v22 = vld [vmem:[%s0] sm:$0xff]
    %v23 = vld [vmem:[%s3] sm:$0xff]
    %v24 = vld [vmem:[%s3 + $0x8] sm:$0xff]
    %v25 = vld [vmem:[%s3 + $0x10] sm:$0xff]
    %v26 = vld [vmem:[%s3 + $0x18] sm:$0xff]
    %28 = vset.pattern.permute.xlu0 0
    %29 = vperm.xlu0 %28, %v23
    %v30 = vpop.permute.xlu0 %29
    %33 = vset.pattern.permute.xlu0 0
    %34 = vperm.xlu0 %33, %v24
    %v35 = vpop.permute.xlu0 %34
    %38 = vset.pattern.permute.xlu0 0
    %39 = vperm.xlu0 %38, %v25
    %v40 = vpop.permute.xlu0 %39
    %43 = vset.pattern.permute.xlu0 0
    %44 = vperm.xlu0 %43, %v26
    %v45 = vpop.permute.xlu0 %44
    %vm47 = vcmask 105472
    %v49 = vsel %vm47, %v18, 0
    %v52 = vsel %vm47, %v19, 0
    %v55 = vsel %vm47, %v20, 0
    %v58 = vsel %vm47, %v21, 0
    %v61 = vsel %vm47, %v22, 0
    %63 = vmatprep.subr.mxu0 0.0
    %64 = vmatpush1.xpose.msra.mxu0 %v61
    %65 = vmatprep.subr.mxu0 0.0
    %66 = vmatpush1.xpose.msra.mxu0 0.0
    %67 = vmatprep.subr.mxu0 0.0
    %68 = vmatpush1.xpose.msra.mxu0 0.0
    %69 = vmatprep.subr.mxu0 0.0
    %70 = vmatpush1.xpose.msra.mxu0 0.0
    %71 = vmatprep.subr.mxu0 0.0
    %72 = vmatpush1.xpose.msra.mxu0 0.0
    %73 = vmatprep.subr.mxu0 0.0
    %74 = vmatpush1.xpose.msra.mxu0 0.0
    %75 = vmatprep.subr.mxu0 0.0
    %76 = vmatpush1.xpose.msra.mxu0 0.0
    %77 = vmatprep.subr.mxu0 0.0
    %78 = vmatpush1.xpose.msra.mxu0 0.0
    %79 = vmatprep.subr.mxu0 0.0
    %80 = vmatpush1.xpose.msra.mxu0 0.0
    %81 = vmatprep.subr.mxu0 0.0
    %82 = vmatpush1.xpose.msra.mxu0 0.0
    %83 = vmatprep.subr.mxu0 0.0
    %84 = vmatpush1.xpose.msra.mxu0 0.0
    %85 = vmatprep.subr.mxu0 0.0
    %86 = vmatpush1.xpose.msra.mxu0 0.0
    %87 = vmatprep.subr.mxu0 0.0
    %88 = vmatpush1.xpose.msra.mxu0 0.0
    %89 = vmatprep.subr.mxu0 0.0
    %90 = vmatpush1.xpose.msra.mxu0 0.0
    %91 = vmatprep.subr.mxu0 0.0
    %92 = vmatpush1.xpose.msra.mxu0 0.0
    %93 = vmatprep.subr.mxu0 0.0
    %94 = vmatpush1.xpose.msra.mxu0 0.0
    %95 = vmatprep.subr.mxu0 0.0
    %96 = vmatpush1.xpose.msra.mxu0 0.0
    %97 = vmatprep.subr.mxu0 0.0
    %98 = vmatpush1.xpose.msra.mxu0 0.0
    %99 = vmatprep.subr.mxu0 0.0
    %100 = vmatpush1.xpose.msra.mxu0 0.0
    %101 = vmatprep.subr.mxu0 0.0
    %102 = vmatpush1.xpose.msra.mxu0 0.0
    %103 = vmatprep.subr.mxu0 0.0
    %104 = vmatpush1.xpose.msra.mxu0 0.0
    %105 = vmatprep.subr.mxu0 0.0
    %106 = vmatpush1.xpose.msra.mxu0 0.0
    %107 = vmatprep.subr.mxu0 0.0
    %108 = vmatpush1.xpose.msra.mxu0 0.0
    %109 = vmatprep.subr.mxu0 0.0
    %110 = vmatpush1.xpose.msra.mxu0 0.0
    %111 = vmatprep.subr.mxu0 0.0
    %112 = vmatpush1.xpose.msra.mxu0 0.0
    %113 = vmatprep.subr.mxu0 0.0
    %114 = vmatpush1.xpose.msra.mxu0 0.0
    %115 = vmatprep.subr.mxu0 0.0
    %116 = vmatpush1.xpose.msra.mxu0 0.0
    %117 = vmatprep.subr.mxu0 0.0
    %118 = vmatpush1.xpose.msra.mxu0 0.0
    %119 = vmatprep.subr.mxu0 0.0
    %120 = vmatpush1.xpose.msra.mxu0 0.0
    %121 = vmatprep.subr.mxu0 0.0
    %122 = vmatpush1.xpose.msra.mxu0 0.0
    %123 = vmatprep.subr.mxu0 0.0
    %124 = vmatpush1.xpose.msra.mxu0 0.0
    %125 = vmatprep.subr.mxu0 0.0
    %126 = vmatpush1.xpose.msra.mxu0 0.0
    %127 = vmatprep.mubr.f32.mxu0 0.0
    %128 = vmatmul.mubr.f32.gmra.mrb[0].mxu0 %v49
    %v129 = vpop.f32.mrb[0].mxu0
    %v130 = vadd.f32 %v30, %v129
    %v131 = vpop.f32.mrb[0].mxu0
    %132 = vmatprep.mubr.f32.mxu0 0.0
    %133 = vmatmul.mubr.f32.gmra.mrb[0].mxu0 %v52
    %v134 = vpop.f32.mrb[0].mxu0
    %v135 = vadd.f32 %v35, %v134
    %v136 = vpop.f32.mrb[0].mxu0
    %137 = vmatprep.mubr.f32.mxu0 0.0
    %138 = vmatmul.mubr.f32.gmra.mrb[0].mxu0 %v55
    %v139 = vpop.f32.mrb[0].mxu0
    %v140 = vadd.f32 %v40, %v139
    %v141 = vpop.f32.mrb[0].mxu0
    %142 = vmatprep.mubr.f32.mxu0 0.0
    %143 = vmatmul.mubr.f32.gmra.mrb[0].mxu0 %v58
    %v144 = vpop.f32.mrb[0].mxu0
    %v145 = vadd.f32 %v45, %v144
    %v146 = vpop.f32.mrb[0].mxu0
    %147 = vdwg.mxu0
    %v148 = vmax.f32 %v130, 0.0
    %v149 = vmax.f32 %v135, 0.0
    %v150 = vmax.f32 %v140, 0.0
    %v151 = vmax.f32 %v145, 0.0
    %v152 = vld [vmem:[%s2] sm:$0xff]
    %v153 = vld [vmem:[%s2 + $0x8] sm:$0xff]
    %v154 = vld [vmem:[%s2 + $0x10] sm:$0xff]
    %v155 = vld [vmem:[%s2 + $0x18] sm:$0xff]
    %s156 = scalar_lea.vmem %s3, 32
    %v157 = vld [vmem:[%s156] sm:$0xff]
    %v158 = vld [vmem:[%s156 + $0x8] sm:$0xff]
    %v159 = vld [vmem:[%s156 + $0x10] sm:$0xff]
    %v160 = vld [vmem:[%s156 + $0x18] sm:$0xff]
    %162 = vset.pattern.permute.xlu0 0
    %163 = vperm.xlu0 %162, %v157
    %v164 = vpop.permute.xlu0 %163
    %167 = vset.pattern.permute.xlu0 0
    %168 = vperm.xlu0 %167, %v158
    %v169 = vpop.permute.xlu0 %168
    %172 = vset.pattern.permute.xlu0 0
    %173 = vperm.xlu0 %172, %v159
    %v174 = vpop.permute.xlu0 %173
    %177 = vset.pattern.permute.xlu0 0
    %178 = vperm.xlu0 %177, %v160
    %v179 = vpop.permute.xlu0 %178
    %vm181 = vcmask 261120
    %v183 = vsel %vm181, %v152, 0
    %v186 = vsel %vm181, %v153, 0
    %v189 = vsel %vm181, %v154, 0
    %v192 = vsel %vm181, %v155, 0
    %194 = vmatprep.subr.mxu0 0.0
    %195 = vmatpush1.msra.mxu0 %v148
    %196 = vmatprep.subr.mxu0 0.0
    %197 = vmatpush1.msra.mxu0 %v149
    %198 = vmatprep.subr.mxu0 0.0
    %199 = vmatpush1.msra.mxu0 %v150
    %200 = vmatprep.subr.mxu0 0.0
    %201 = vmatpush1.msra.mxu0 %v151
    %202 = vmatprep.subr.mxu0 0.0
    %203 = vmatpush1.msra.mxu0 0.0
    %204 = vmatprep.subr.mxu0 0.0
    %205 = vmatpush1.msra.mxu0 0.0
    %206 = vmatprep.subr.mxu0 0.0
    %207 = vmatpush1.msra.mxu0 0.0
    %208 = vmatprep.subr.mxu0 0.0
    %209 = vmatpush1.msra.mxu0 0.0
    %210 = vmatprep.subr.mxu0 0.0
    %211 = vmatpush1.msra.mxu0 0.0
    %212 = vmatprep.subr.mxu0 0.0
    %213 = vmatpush1.msra.mxu0 0.0
    %214 = vmatprep.subr.mxu0 0.0
    %215 = vmatpush1.msra.mxu0 0.0
    %216 = vmatprep.subr.mxu0 0.0
    %217 = vmatpush1.msra.mxu0 0.0
    %218 = vmatprep.subr.mxu0 0.0
    %219 = vmatpush1.msra.mxu0 0.0
    %220 = vmatprep.subr.mxu0 0.0
    %221 = vmatpush1.msra.mxu0 0.0
    %222 = vmatprep.subr.mxu0 0.0
    %223 = vmatpush1.msra.mxu0 0.0
    %224 = vmatprep.subr.mxu0 0.0
    %225 = vmatpush1.msra.mxu0 0.0
    %226 = vmatprep.subr.mxu0 0.0
    %227 = vmatpush1.msra.mxu0 0.0
    %228 = vmatprep.subr.mxu0 0.0
    %229 = vmatpush1.msra.mxu0 0.0
    %230 = vmatprep.subr.mxu0 0.0
    %231 = vmatpush1.msra.mxu0 0.0
    %232 = vmatprep.subr.mxu0 0.0
    %233 = vmatpush1.msra.mxu0 0.0
    %234 = vmatprep.subr.mxu0 0.0
    %235 = vmatpush1.msra.mxu0 0.0
    %236 = vmatprep.subr.mxu0 0.0
    %237 = vmatpush1.msra.mxu0 0.0
    %238 = vmatprep.subr.mxu0 0.0
    %239 = vmatpush1.msra.mxu0 0.0
    %240 = vmatprep.subr.mxu0 0.0
    %241 = vmatpush1.msra.mxu0 0.0
    %242 = vmatprep.subr.mxu0 0.0
    %243 = vmatpush1.msra.mxu0 0.0
    %244 = vmatprep.subr.mxu0 0.0
    %245 = vmatpush1.msra.mxu0 0.0
    %246 = vmatprep.subr.mxu0 0.0
    %247 = vmatpush1.msra.mxu0 0.0
    %248 = vmatprep.subr.mxu0 0.0
    %249 = vmatpush1.msra.mxu0 0.0
    %250 = vmatprep.subr.mxu0 0.0
    %251 = vmatpush1.msra.mxu0 0.0
    %252 = vmatprep.subr.mxu0 0.0
    %253 = vmatpush1.msra.mxu0 0.0
    %254 = vmatprep.subr.mxu0 0.0
    %255 = vmatpush1.msra.mxu0 0.0
    %256 = vmatprep.subr.mxu0 0.0
    %257 = vmatpush1.msra.mxu0 0.0
    %258 = vmatprep.mubr.f32.mxu0 0.0
    %259 = vmatmul.mubr.f32.gmra.mrb[0].mxu0 %v183
    %v260 = vpop.f32.mrb[0].mxu0
    %v261 = vadd.f32 %v164, %v260
    %v262 = vpop.f32.mrb[0].mxu0
    %263 = vmatprep.mubr.f32.mxu0 0.0
    %264 = vmatmul.mubr.f32.gmra.mrb[0].mxu0 %v186
    %v265 = vpop.f32.mrb[0].mxu0
    %v266 = vadd.f32 %v169, %v265
    %v267 = vpop.f32.mrb[0].mxu0
    %268 = vmatprep.mubr.f32.mxu0 0.0
    %269 = vmatmul.mubr.f32.gmra.mrb[0].mxu0 %v189
    %v270 = vpop.f32.mrb[0].mxu0
    %v271 = vadd.f32 %v174, %v270
    %v272 = vpop.f32.mrb[0].mxu0
    %273 = vmatprep.mubr.f32.mxu0 0.0
    %274 = vmatmul.mubr.f32.gmra.mrb[0].mxu0 %v192
    %v275 = vpop.f32.mrb[0].mxu0
    %v276 = vadd.f32 %v179, %v275
    %v277 = vpop.f32.mrb[0].mxu0
    %278 = vdwg.mxu0
    %v279 = vmax.f32 %v261, 0.0
    %v280 = vmax.f32 %v266, 0.0
    %v281 = vmax.f32 %v271, 0.0
    %v282 = vmax.f32 %v276, 0.0
    %s283 = scalar_lea.vmem %s2, 32
    %v284 = vld [vmem:[%s283] sm:$0xff]
    %v285 = vld [vmem:[%s283 + $0x8] sm:$0xff]
    %v286 = vld [vmem:[%s283 + $0x10] sm:$0xff]
    %v287 = vld [vmem:[%s283 + $0x18] sm:$0xff]
    %s288 = scalar_lea.vmem %s3, 64
    %v289 = vld [vmem:[%s288] sm:$0xff]
    %v290 = vld [vmem:[%s288 + $0x8] sm:$0xff]
    %v291 = vld [vmem:[%s288 + $0x10] sm:$0xff]
    %v292 = vld [vmem:[%s288 + $0x18] sm:$0xff]
    %294 = vset.pattern.permute.xlu0 0
    %295 = vperm.xlu0 %294, %v289
    %v296 = vpop.permute.xlu0 %295
    %299 = vset.pattern.permute.xlu0 0
    %300 = vperm.xlu0 %299, %v290
    %v301 = vpop.permute.xlu0 %300
    %304 = vset.pattern.permute.xlu0 0
    %305 = vperm.xlu0 %304, %v291
    %v306 = vpop.permute.xlu0 %305
    %309 = vset.pattern.permute.xlu0 0
    %310 = vperm.xlu0 %309, %v292
    %v311 = vpop.permute.xlu0 %310
    %v314 = vsel %vm181, %v284, 0
    %v317 = vsel %vm181, %v285, 0
    %v320 = vsel %vm181, %v286, 0
    %v323 = vsel %vm181, %v287, 0
    %325 = vmatprep.subr.mxu0 0.0
    %326 = vmatpush1.msra.mxu0 %v279
    %327 = vmatprep.subr.mxu0 0.0
    %328 = vmatpush1.msra.mxu0 %v280
    %329 = vmatprep.subr.mxu0 0.0
    %330 = vmatpush1.msra.mxu0 %v281
    %331 = vmatprep.subr.mxu0 0.0
    %332 = vmatpush1.msra.mxu0 %v282
    %333 = vmatprep.subr.mxu0 0.0
    %334 = vmatpush1.msra.mxu0 0.0
    %335 = vmatprep.subr.mxu0 0.0
    %336 = vmatpush1.msra.mxu0 0.0
    %337 = vmatprep.subr.mxu0 0.0
    %338 = vmatpush1.msra.mxu0 0.0
    %339 = vmatprep.subr.mxu0 0.0
    %340 = vmatpush1.msra.mxu0 0.0
    %341 = vmatprep.subr.mxu0 0.0
    %342 = vmatpush1.msra.mxu0 0.0
    %343 = vmatprep.subr.mxu0 0.0
    %344 = vmatpush1.msra.mxu0 0.0
    %345 = vmatprep.subr.mxu0 0.0
    %346 = vmatpush1.msra.mxu0 0.0
    %347 = vmatprep.subr.mxu0 0.0
    %348 = vmatpush1.msra.mxu0 0.0
    %349 = vmatprep.subr.mxu0 0.0
    %350 = vmatpush1.msra.mxu0 0.0
    %351 = vmatprep.subr.mxu0 0.0
    %352 = vmatpush1.msra.mxu0 0.0
    %353 = vmatprep.subr.mxu0 0.0
    %354 = vmatpush1.msra.mxu0 0.0
    %355 = vmatprep.subr.mxu0 0.0
    %356 = vmatpush1.msra.mxu0 0.0
    %357 = vmatprep.subr.mxu0 0.0
    %358 = vmatpush1.msra.mxu0 0.0
    %359 = vmatprep.subr.mxu0 0.0
    %360 = vmatpush1.msra.mxu0 0.0
    %361 = vmatprep.subr.mxu0 0.0
    %362 = vmatpush1.msra.mxu0 0.0
    %363 = vmatprep.subr.mxu0 0.0
    %364 = vmatpush1.msra.mxu0 0.0
    %365 = vmatprep.subr.mxu0 0.0
    %366 = vmatpush1.msra.mxu0 0.0
    %367 = vmatprep.subr.mxu0 0.0
    %368 = vmatpush1.msra.mxu0 0.0
    %369 = vmatprep.subr.mxu0 0.0
    %370 = vmatpush1.msra.mxu0 0.0
    %371 = vmatprep.subr.mxu0 0.0
    %372 = vmatpush1.msra.mxu0 0.0
    %373 = vmatprep.subr.mxu0 0.0
    %374 = vmatpush1.msra.mxu0 0.0
    %375 = vmatprep.subr.mxu0 0.0
    %376 = vmatpush1.msra.mxu0 0.0
    %377 = vmatprep.subr.mxu0 0.0
    %378 = vmatpush1.msra.mxu0 0.0
    %379 = vmatprep.subr.mxu0 0.0
    %380 = vmatpush1.msra.mxu0 0.0
    %381 = vmatprep.subr.mxu0 0.0
    %382 = vmatpush1.msra.mxu0 0.0
    %383 = vmatprep.subr.mxu0 0.0
    %384 = vmatpush1.msra.mxu0 0.0
    %385 = vmatprep.subr.mxu0 0.0
    %386 = vmatpush1.msra.mxu0 0.0
    %387 = vmatprep.subr.mxu0 0.0
    %388 = vmatpush1.msra.mxu0 0.0
    %389 = vmatprep.mubr.f32.mxu0 0.0
    %390 = vmatmul.mubr.f32.gmra.mrb[0].mxu0 %v314
    %v391 = vpop.f32.mrb[0].mxu0
    %v392 = vadd.f32 %v296, %v391
    %v393 = vpop.f32.mrb[0].mxu0
    %394 = vmatprep.mubr.f32.mxu0 0.0
    %395 = vmatmul.mubr.f32.gmra.mrb[0].mxu0 %v317
    %v396 = vpop.f32.mrb[0].mxu0
    %v397 = vadd.f32 %v301, %v396
    %v398 = vpop.f32.mrb[0].mxu0
    %399 = vmatprep.mubr.f32.mxu0 0.0
    %400 = vmatmul.mubr.f32.gmra.mrb[0].mxu0 %v320
    %v401 = vpop.f32.mrb[0].mxu0
    %v402 = vadd.f32 %v306, %v401
    %v403 = vpop.f32.mrb[0].mxu0
    %404 = vmatprep.mubr.f32.mxu0 0.0
    %405 = vmatmul.mubr.f32.gmra.mrb[0].mxu0 %v323
    %v406 = vpop.f32.mrb[0].mxu0
    %v407 = vadd.f32 %v311, %v406
    %v408 = vpop.f32.mrb[0].mxu0
    %409 = vdwg.mxu0
    %v410 = vmax.f32 %v392, 0.0
    %v411 = vmax.f32 %v397, 0.0
    %v412 = vmax.f32 %v402, 0.0
    %v413 = vmax.f32 %v407, 0.0
    %s414 = scalar_lea.vmem %s2, 64
    %v415 = vld [vmem:[%s414] sm:$0xff]
    %v416 = vld [vmem:[%s414 + $0x8] sm:$0xff]
    %v417 = vld [vmem:[%s414 + $0x10] sm:$0xff]
    %v418 = vld [vmem:[%s414 + $0x18] sm:$0xff]
    %s419 = scalar_lea.vmem %s3, 96
    %v420 = vld [vmem:[%s419] sm:$0xff]
    %v421 = vld [vmem:[%s419 + $0x8] sm:$0xff]
    %v422 = vld [vmem:[%s419 + $0x10] sm:$0xff]
    %v423 = vld [vmem:[%s419 + $0x18] sm:$0xff]
    %425 = vset.pattern.permute.xlu0 0
    %426 = vperm.xlu0 %425, %v420
    %v427 = vpop.permute.xlu0 %426
    %430 = vset.pattern.permute.xlu0 0
    %431 = vperm.xlu0 %430, %v421
    %v432 = vpop.permute.xlu0 %431
    %434 = vset.pattern.permute.xlu0 0
    %435 = vperm.xlu0 %434, %v422
    %v436 = vpop.permute.xlu0 %435
    %438 = vset.pattern.permute.xlu0 0
    %439 = vperm.xlu0 %438, %v423
    %v440 = vpop.permute.xlu0 %439
    %v442 = vsel %vm181, %v415, 0
    %v445 = vsel %vm181, %v416, 0
    %v448 = vsel %vm181, %v417, 0
    %v451 = vsel %vm181, %v418, 0
    %453 = vmatprep.subr.mxu0 0.0
    %454 = vmatpush1.msra.mxu0 %v410
    %455 = vmatprep.subr.mxu0 0.0
    %456 = vmatpush1.msra.mxu0 %v411
    %457 = vmatprep.subr.mxu0 0.0
    %458 = vmatpush1.msra.mxu0 %v412
    %459 = vmatprep.subr.mxu0 0.0
    %460 = vmatpush1.msra.mxu0 %v413
    %461 = vmatprep.subr.mxu0 0.0
    %462 = vmatpush1.msra.mxu0 0.0
    %463 = vmatprep.subr.mxu0 0.0
    %464 = vmatpush1.msra.mxu0 0.0
    %465 = vmatprep.subr.mxu0 0.0
    %466 = vmatpush1.msra.mxu0 0.0
    %467 = vmatprep.subr.mxu0 0.0
    %468 = vmatpush1.msra.mxu0 0.0
    %469 = vmatprep.subr.mxu0 0.0
    %470 = vmatpush1.msra.mxu0 0.0
    %471 = vmatprep.subr.mxu0 0.0
    %472 = vmatpush1.msra.mxu0 0.0
    %473 = vmatprep.subr.mxu0 0.0
    %474 = vmatpush1.msra.mxu0 0.0
    %475 = vmatprep.subr.mxu0 0.0
    %476 = vmatpush1.msra.mxu0 0.0
    %477 = vmatprep.subr.mxu0 0.0
    %478 = vmatpush1.msra.mxu0 0.0
    %479 = vmatprep.subr.mxu0 0.0
    %480 = vmatpush1.msra.mxu0 0.0
    %481 = vmatprep.subr.mxu0 0.0
    %482 = vmatpush1.msra.mxu0 0.0
    %483 = vmatprep.subr.mxu0 0.0
    %484 = vmatpush1.msra.mxu0 0.0
    %485 = vmatprep.subr.mxu0 0.0
    %486 = vmatpush1.msra.mxu0 0.0
    %487 = vmatprep.subr.mxu0 0.0
    %488 = vmatpush1.msra.mxu0 0.0
    %489 = vmatprep.subr.mxu0 0.0
    %490 = vmatpush1.msra.mxu0 0.0
    %491 = vmatprep.subr.mxu0 0.0
    %492 = vmatpush1.msra.mxu0 0.0
    %493 = vmatprep.subr.mxu0 0.0
    %494 = vmatpush1.msra.mxu0 0.0
    %495 = vmatprep.subr.mxu0 0.0
    %496 = vmatpush1.msra.mxu0 0.0
    %497 = vmatprep.subr.mxu0 0.0
    %498 = vmatpush1.msra.mxu0 0.0
    %499 = vmatprep.subr.mxu0 0.0
    %500 = vmatpush1.msra.mxu0 0.0
    %501 = vmatprep.subr.mxu0 0.0
    %502 = vmatpush1.msra.mxu0 0.0
    %503 = vmatprep.subr.mxu0 0.0
    %504 = vmatpush1.msra.mxu0 0.0
    %505 = vmatprep.subr.mxu0 0.0
    %506 = vmatpush1.msra.mxu0 0.0
    %507 = vmatprep.subr.mxu0 0.0
    %508 = vmatpush1.msra.mxu0 0.0
    %509 = vmatprep.subr.mxu0 0.0
    %510 = vmatpush1.msra.mxu0 0.0
    %511 = vmatprep.subr.mxu0 0.0
    %512 = vmatpush1.msra.mxu0 0.0
    %513 = vmatprep.subr.mxu0 0.0
    %514 = vmatpush1.msra.mxu0 0.0
    %515 = vmatprep.subr.mxu0 0.0
    %516 = vmatpush1.msra.mxu0 0.0
    %517 = vmatprep.mubr.f32.mxu0 0.0
    %518 = vmatmul.mubr.f32.gmra.mrb[0].mxu0 %v442
    %v519 = vpop.f32.mrb[0].mxu0
    %v520 = vadd.f32 %v427, %v519
    %v521 = vpop.f32.mrb[0].mxu0
    %522 = vmatprep.mubr.f32.mxu0 0.0
    %523 = vmatmul.mubr.f32.gmra.mrb[0].mxu0 %v445
    %v524 = vpop.f32.mrb[0].mxu0
    %v525 = vpop.f32.mrb[0].mxu0
    %526 = vmatprep.mubr.f32.mxu0 0.0
    %527 = vmatmul.mubr.f32.gmra.mrb[0].mxu0 %v448
    %v528 = vpop.f32.mrb[0].mxu0
    %v529 = vpop.f32.mrb[0].mxu0
    %530 = vmatprep.mubr.f32.mxu0 0.0
    %531 = vmatmul.mubr.f32.gmra.mrb[0].mxu0 %v451
    %v532 = vpop.f32.mrb[0].mxu0
    %v533 = vpop.f32.mrb[0].mxu0
    %534 = vdwg.mxu0
    %vm535 = vcmask 64512
    %536 = vst.msk [vmem:[#allocation2] sm:$0xff] %vm535, %v520
    // Predicated region
    $region18: #{tpu_custom_call.1} parent=1 // pred_check
      _
    $region19: #{tpu_custom_call.1} parent=1 // pred_check_branch
      %538 = sbr.rel (0) target = $region21
    $region20: #{tpu_custom_call.1} parent=1 // pred_region
      %s540 = ssub.s32 128, 128
      %541 = vsyncadd [#allocation3], %s540
      %s543 = sshll.u32 [#allocation2], 4
      %s544 = int_to_ptr.vmem [resolvable:$true] %s543
      %546 = dma.vmem_to_hbm [thread:$0]  %s544, 128, %s4, [#allocation3]
    $region21: #{tpu_custom_call.1} parent=1 // pred_fallthru
      _
    // Predicated region
    $region22: #{tpu_custom_call.1} parent=1 // pred_check
      _
    $region23: #{tpu_custom_call.1} parent=1 // pred_check_branch
      %548 = sbr.rel (0) target = $region25
    $region24: #{tpu_custom_call.1} parent=1 // pred_region
      %549 = dma.done [#allocation3], 128
    $region25: #{tpu_custom_call.1} parent=1 // pred_fallthru
      _
    %550 = vsyncpa [#allocation3], 1

</llo_original>
